<compile_context>
chip_gen: v5e
topology: v5e:2x2
jax: 0.10.0
libtpu: 0.0.40
codegen_flags: <defaults>
</compile_context>

<pallas_src>
import numpy as np
import jax
import jax.numpy as jnp
from jax import lax
from jax.experimental import pallas as pl
from jax.experimental.pallas import tpu as pltpu

# ---- RandomBlockMask3D.__init__ defaults (module has no learned weights) ----
MIN_BLOCK_SIZE = 1
MAX_BLOCK_SIZE = None
ASPECT_RATIO_RANGE = (0.75, 1.25)
NUM_MASKING_PATCHES = None
MIN_NUM_PATCHES = 4
MAX_NUM_PATCHES = None
MASK_RATIO = 0.75          # forward() hard-codes advanced_block_mask(mask_ratio=0.75)
NUM_ATTEMPTS = 50
B_TILE = 8                 # batch rows packed into the sublane dim per grid step


def make_kernel(D, H, W, b_real, *,
                min_block_size=MIN_BLOCK_SIZE,
                max_block_size=MAX_BLOCK_SIZE,
                num_masking_patches=NUM_MASKING_PATCHES,
                min_num_patches=MIN_NUM_PATCHES,
                max_num_patches=MAX_NUM_PATCHES,
                mask_ratio=MASK_RATIO):
    total = D * H * W
    target_masked = int(total * mask_ratio)
    assert target_masked < 2 ** 31 - 1

    def kernel(coords_ref, cubes_ref, params_ref, out_ref, mask_sc, cm_sc, flag_sc):
        # ---------------- loop-invariant prologue (once per grid step) ----------------
        d_idx = coords_ref[0:1, :]            # (1, dhw_pad) i32, -1 on padded lanes
        h_idx = coords_ref[1:2, :]
        w_idx = coords_ref[2:3, :]
        cubes = cubes_ref[...]                # (1, CB) i32 exact (saturated) cube table
        P = params_ref[...]                   # (5*B_TILE, NUM_ATTEMPTS) f32
        att_iota = lax.broadcasted_iota(jnp.int32, (1, NUM_ATTEMPTS), 1)

        row = lax.broadcasted_iota(jnp.int32, (B_TILE, 1), 0)
        is_pad = (pl.program_id(0) * B_TILE + row) >= b_real
        # Padded batch rows start "already finished": they never place blocks and
        # never delay the early exit.
        mask_sc[...] = jnp.zeros_like(mask_sc)
        cm_sc[...] = jnp.where(is_pad, target_masked, 0).astype(jnp.int32)
        flag_sc[...] = jnp.zeros_like(flag_sc)

        @pl.loop(0, NUM_ATTEMPTS)
        def _attempt(t):
            # Early exit: once min(cm) >= target for the whole tile, every remaining
            # attempt costs only this scalar read + branch.
            @pl.when(flag_sc[0, 0] < target_masked)
            def _():
                cm = cm_sc[...]                                   # (B_TILE, 1) i32
                remaining = target_masked - cm

                # _get_target_patches (defaults: num/max masking patches = None)
                if num_masking_patches is not None:
                    tp = jnp.minimum(remaining, num_masking_patches)
                else:
                    inner = remaining if max_num_patches is None else jnp.minimum(
                        remaining, max_num_patches)
                    tp = jnp.maximum(min_num_patches, inner)

                # per-attempt uniforms: one select + one lane reduce extracts column t
                # of [aspect | 1/aspect | u0 | u1 | u2] for all 8 batches at once
                onehot = att_iota == t                            # (1, NUM_ATTEMPTS)
                sel = jnp.sum(jnp.where(onehot, P, 0.0), axis=1, keepdims=True)
                aspect = sel[0 * B_TILE:1 * B_TILE]               # (B_TILE, 1) f32
                inv_asp = sel[1 * B_TILE:2 * B_TILE]
                u0 = sel[2 * B_TILE:3 * B_TILE]
                u1 = sel[3 * B_TILE:4 * B_TILE]
                u2 = sel[4 * B_TILE:5 * B_TILE]

                # _calculate_3d_block_dims: exact integer cube root via table count
                base = jnp.maximum(
                    jnp.sum((cubes <= tp).astype(jnp.int32), axis=1, keepdims=True), 1)
                bsq = base * base
                # exact bd0 = tp // bsq : f32 divide + one-step integer correction
                q = (tp.astype(jnp.float32) / bsq.astype(jnp.float32)).astype(jnp.int32)
                r = tp - q * bsq
                q = q + (r >= bsq).astype(jnp.int32) - (r < 0).astype(jnp.int32)
                base_f = base.astype(jnp.float32)
                bd0 = jnp.maximum(1, q)
                # f32 multiplies are IEEE on the VPU -> exact parity with the numpy
                # reference that consumes the same realized aspect / 1/aspect values.
                bd1 = jnp.maximum(1, (base_f * aspect).astype(jnp.int32))
                bd2 = jnp.maximum(1, (base_f * inv_asp).astype(jnp.int32))

                # _apply_size_constraints
                bd0 = jnp.maximum(bd0, min_block_size)
                bd1 = jnp.maximum(bd1, min_block_size)
                bd2 = jnp.maximum(bd2, min_block_size)
                if max_block_size is not None:
                    bd0 = jnp.minimum(bd0, max_block_size)
                    bd1 = jnp.minimum(bd1, max_block_size)
                    bd2 = jnp.minimum(bd2, max_block_size)
                bd0 = jnp.minimum(bd0, D)
                bd1 = jnp.minimum(bd1, H)
                bd2 = jnp.minimum(bd2, W)

                # _try_place_block: random starts, overlap test, predicated OR
                vr0 = D - bd0 + 1
                vr1 = H - bd1 + 1
                vr2 = W - bd2 + 1
                s0 = jnp.minimum((u0 * vr0.astype(jnp.float32)).astype(jnp.int32), vr0 - 1)
                s1 = jnp.minimum((u1 * vr1.astype(jnp.float32)).astype(jnp.int32), vr1 - 1)
                s2 = jnp.minimum((u2 * vr2.astype(jnp.float32)).astype(jnp.int32), vr2 - 1)

                region = ((d_idx >= s0) & (d_idx < s0 + bd0) &
                          (h_idx >= s1) & (h_idx < s1 + bd1) &
                          (w_idx >= s2) & (w_idx < s2 + bd2))      # (B_TILE, dhw_pad)

                mask = mask_sc[...]
                has_free = jnp.sum((region & (mask == 0)).astype(jnp.int32),
                                   axis=1, keepdims=True) > 0      # single fused reduce
                place = (cm < target_masked) & has_free            # (B_TILE, 1)

                mask_sc[...] = mask | (region & place).astype(jnp.int32)
                cm_new = cm + jnp.where(place, bd0 * bd1 * bd2, 0)
                cm_sc[...] = cm_new
                flag_sc[...] = jnp.min(cm_new, axis=0, keepdims=True)

        out_ref[...] = mask_sc[...].astype(jnp.int8)

    return kernel


def random_block_mask_3d(size, key):
    """Pallas equivalent of RandomBlockMask3D.forward(size) (advanced mode)."""
    B, D, H, W = size
    dhw = D * H * W
    dhw_pad = ((dhw + 127) // 128) * 128          # lane-dense output / stores
    nt = (B + B_TILE - 1) // B_TILE               # grid steps, 8 batches each
    b_pad = nt * B_TILE
    target_masked = int(dhw * MASK_RATIO)

    # ---- pre-sampled i.i.d. uniforms replacing torch/random RNG ----
    k1, k2 = jax.random.split(key)
    aspect_u = jax.random.uniform(k1, (b_pad, NUM_ATTEMPTS), jnp.float32)
    start_u = jax.random.uniform(k2, (b_pad, 3 * NUM_ATTEMPTS), jnp.float32)
    alo, ahi = ASPECT_RATIO_RANGE
    aspect = jnp.float32(alo) + jnp.float32(ahi - alo) * aspect_u
    inv_aspect = jnp.float32(1.0) / aspect        # realized values shared with reference
    u0 = start_u[:, 0::3]
    u1 = start_u[:, 1::3]
    u2 = start_u[:, 2::3]

    # pack as (nt, 5*B_TILE, NUM_ATTEMPTS): rows = [aspect | 1/aspect | u0 | u1 | u2]
    params = jnp.stack([aspect, inv_aspect, u0, u1, u2], axis=0)       # (5, b_pad, NA)
    params = params.reshape(5, nt, B_TILE, NUM_ATTEMPTS).transpose(1, 0, 2, 3)
    params = params.reshape(nt, 5 * B_TILE, NUM_ATTEMPTS)

    # host-computed flattened (d, h, w) lane coordinates; padded lanes marked -1
    lin = np.arange(dhw_pad, dtype=np.int64)
    valid = lin < dhw
    coords = np.stack([np.where(valid, lin // (H * W), -1),
                       np.where(valid, (lin // W) % H, -1),
                       np.where(valid, lin % W, -1)], axis=0).astype(np.int32)

    # host-computed cube table for the exact integer cube root (i32-safe, saturating)
    max_tp = max(target_masked, MIN_NUM_PATCHES, 1)
    base_limit = 1
    while (base_limit + 1) ** 3 <= max_tp:
        base_limit += 1
    cb_lanes = max(128, ((base_limit + 127) // 128) * 128)
    cubes = np.minimum(np.arange(1, cb_lanes + 1, dtype=np.int64) ** 3,
                       2 ** 31 - 1).astype(np.int32)[None, :]

    kernel = make_kernel(D, H, W, B)
    out = pl.pallas_call(
        kernel,
        out_shape=jax.ShapeDtypeStruct((nt, B_TILE, dhw_pad), jnp.int8),
        grid=(nt,),
        in_specs=[
            pl.BlockSpec((3, dhw_pad), lambda b: (0, 0)),        # coords: fetched once
            pl.BlockSpec((1, cb_lanes), lambda b: (0, 0)),       # cube table: fetched once
            pl.BlockSpec((None, 5 * B_TILE, NUM_ATTEMPTS), lambda b: (b, 0, 0)),
        ],
        out_specs=pl.BlockSpec((None, B_TILE, dhw_pad), lambda b: (b, 0, 0)),
        scratch_shapes=[
            pltpu.VMEM((B_TILE, dhw_pad), jnp.int32),   # running mask (i32, OR-updated)
            pltpu.VMEM((B_TILE, 1), jnp.int32),         # per-batch masked-cell counter
            pltpu.VMEM((1, 1), jnp.int32),              # min(cm) -> early-exit flag
        ],
        compiler_params=pltpu.CompilerParams(dimension_semantics=("parallel",)),
    )(jnp.asarray(coords), jnp.asarray(cubes), params)

    mask = (out.reshape(b_pad, dhw_pad)[:B, :dhw] != 0).reshape(B, D, H, W)
    host_params = dict(aspect=aspect[:B], inv_aspect=inv_aspect[:B],
                       u0=u0[:B], u1=u1[:B], u2=u2[:B])
    return mask, host_params


def reference_mask(size, host_params):
    """Pure-numpy replica of the kernel semantics (same realized f32 uniforms)."""
    B, D, H, W = size
    total = D * H * W
    target = int(total * MASK_RATIO)
    A = np.asarray(host_params["aspect"], np.float32)
    IA = np.asarray(host_params["inv_aspect"], np.float32)
    U0 = np.asarray(host_params["u0"], np.float32)
    U1 = np.asarray(host_params["u1"], np.float32)
    U2 = np.asarray(host_params["u2"], np.float32)
    out = np.zeros((B, D, H, W), dtype=bool)
    for b in range(B):
        mask = np.zeros((D, H, W), dtype=bool)
        cm = 0
        for t in range(NUM_ATTEMPTS):
            if cm >= target:
                break
            remaining = target - cm
            tp = max(MIN_NUM_PATCHES, remaining)
            base = 1
            while (base + 1) ** 3 <= tp:
                base += 1
            bd0 = max(1, tp // (base * base))
            bd1 = max(1, int(np.float32(base) * A[b, t]))
            bd2 = max(1, int(np.float32(base) * IA[b, t]))
            bd0 = min(max(bd0, MIN_BLOCK_SIZE), D)
            bd1 = min(max(bd1, MIN_BLOCK_SIZE), H)
            bd2 = min(max(bd2, MIN_BLOCK_SIZE), W)
            vr0 = D - bd0 + 1
            vr1 = H - bd1 + 1
            vr2 = W - bd2 + 1
            s0 = min(int(U0[b, t] * np.float32(vr0)), vr0 - 1)
            s1 = min(int(U1[b, t] * np.float32(vr1)), vr1 - 1)
            s2 = min(int(U2[b, t] * np.float32(vr2)), vr2 - 1)
            region = mask[s0:s0 + bd0, s1:s1 + bd1, s2:s2 + bd2]
            if (~region).sum() > 0:
                mask[s0:s0 + bd0, s1:s1 + bd1, s2:s2 + bd2] = True
                cm += bd0 * bd1 * bd2
        out[b] = mask
    return out


if __name__ == "__main__":
    B, D, H, W = 2, 8, 8, 8
    key = jax.random.PRNGKey(0)
    mask, host_params = random_block_mask_3d((B, D, H, W), key)
    mask = jax.block_until_ready(mask)

    assert mask.shape == (B, D, H, W)
    assert mask.dtype == jnp.bool_
    m_np = np.asarray(mask)
    assert m_np.any()

    ref = reference_mask((B, D, H, W), host_params)
    assert np.array_equal(m_np, ref), "kernel mask != numpy reference"

    print("KERNEL_OK")
</pallas_src>

<mosaic_0001>
module attributes {stable_mosaic.version = 11 : i64} {
  func.func @kernel(%arg0: i32, %arg1: memref<3x512xi32, #tpu.memory_space<vmem>>, %arg2: memref<1x128xi32, #tpu.memory_space<vmem>>, %arg3: memref<1x40x50xf32, #tpu.memory_space<vmem>>, %arg4: memref<1x8x512xi8, #tpu.memory_space<vmem>>, %arg5: memref<8x512xi32, #tpu.memory_space<vmem>>, %arg6: memref<8x1xi32, #tpu.memory_space<vmem>>, %arg7: memref<1x1xi32, #tpu.memory_space<vmem>>) attributes {dimension_semantics = [#tpu.dimension_semantics<parallel>], iteration_bounds = array<i64: 1>, scalar_prefetch = 0 : i64, scratch_operands = 3 : i64, tpu.core_type = #tpu.core_type<tc>, window_params = [{pipeline_mode = #tpu.pipeline_mode<synchronous>, transform_indices = @transform_0, window_bounds = array<i64: 3, 512>}, {pipeline_mode = #tpu.pipeline_mode<synchronous>, transform_indices = @transform_1, window_bounds = array<i64: 1, 128>}, {transform_indices = @transform_2, window_bounds = array<i64: 1, 40, 50>}, {transform_indices = @transform_3, window_bounds = array<i64: 1, 8, 512>}]} {
    %c0 = arith.constant 0 : index
    %c0_0 = arith.constant 0 : index
    %0 = vector.load %arg1[%c0, %c0_0] : memref<3x512xi32, #tpu.memory_space<vmem>>, vector<1x512xi32>
    %c1 = arith.constant 1 : index
    %c0_1 = arith.constant 0 : index
    %1 = vector.load %arg1[%c1, %c0_1] : memref<3x512xi32, #tpu.memory_space<vmem>>, vector<1x512xi32>
    %c2 = arith.constant 2 : index
    %c0_2 = arith.constant 0 : index
    %2 = vector.load %arg1[%c2, %c0_2] : memref<3x512xi32, #tpu.memory_space<vmem>>, vector<1x512xi32>
    %c0_3 = arith.constant 0 : index
    %c0_4 = arith.constant 0 : index
    %3 = vector.load %arg2[%c0_3, %c0_4] : memref<1x128xi32, #tpu.memory_space<vmem>>, vector<1x128xi32>
    %c0_5 = arith.constant 0 : index
    %c0_6 = arith.constant 0 : index
    %c0_7 = arith.constant 0 : index
    %4 = vector.load %arg3[%c0_5, %c0_6, %c0_7] : memref<1x40x50xf32, #tpu.memory_space<vmem>>, vector<1x40x50xf32>
    %5 = vector.shape_cast %4 : vector<1x40x50xf32> to vector<40x50xf32>
    %6 = tpu.iota {dimensions = array<i32: 1>} : vector<1x50xi32>
    %7 = tpu.iota {dimensions = array<i32: 0>} : vector<8x1xi32>
    %c8_i32 = arith.constant 8 : i32
    %8 = arith.muli %arg0, %c8_i32 : i32
    %9 = vector.broadcast %8 : i32 to vector<8x1xi32>
    %10 = arith.addi %9, %7 : vector<8x1xi32>
    %c2_i32 = arith.constant 2 : i32
    %11 = vector.broadcast %c2_i32 : i32 to vector<8x1xi32>
    %12 = arith.cmpi sge, %10, %11 : vector<8x1xi32>
    %c0_i32 = arith.constant 0 : i32
    %13 = vector.broadcast %c0_i32 : i32 to vector<8x512xi32>
    %c0_8 = arith.constant 0 : index
    %c0_9 = arith.constant 0 : index
    %14 = vector.load %arg5[%c0_8, %c0_9] : memref<8x512xi32, #tpu.memory_space<vmem>>, vector<8x512xi32>
    tpu.vector_store %arg5[%c0_8, %c0_9], %13 {strides = array<i32>} : memref<8x512xi32, #tpu.memory_space<vmem>>, vector<8x512xi32>,
    %c384_i32 = arith.constant 384 : i32
    %c0_i32_10 = arith.constant 0 : i32
    %15 = vector.broadcast %c384_i32 : i32 to vector<8x1xi32>
    %16 = vector.broadcast %c0_i32_10 : i32 to vector<8x1xi32>
    %17 = arith.select %12, %15, %16 : vector<8x1xi1>, vector<8x1xi32>
    %c0_11 = arith.constant 0 : index
    %c0_12 = arith.constant 0 : index
    %18 = vector.load %arg6[%c0_11, %c0_12] : memref<8x1xi32, #tpu.memory_space<vmem>>, vector<8x1xi32>
    tpu.vector_store %arg6[%c0_11, %c0_12], %17 {strides = array<i32>} : memref<8x1xi32, #tpu.memory_space<vmem>>, vector<8x1xi32>,
    %c0_i32_13 = arith.constant 0 : i32
    %19 = vector.broadcast %c0_i32_13 : i32 to vector<1x1xi32>
    %c0_14 = arith.constant 0 : index
    %c0_15 = arith.constant 0 : index
    %20 = vector.load %arg7[%c0_14, %c0_15] : memref<1x1xi32, #tpu.memory_space<vmem>>, vector<1x1xi32>
    tpu.vector_store %arg7[%c0_14, %c0_15], %19 {strides = array<i32>} : memref<1x1xi32, #tpu.memory_space<vmem>>, vector<1x1xi32>,
    %c0_i32_16 = arith.constant 0 : i32
    %c50_i32 = arith.constant 50 : i32
    %21 = arith.addi %c0_i32_16, %c50_i32 : i32
    %c1_i32 = arith.constant 1 : i32
    scf.for %arg8 = %c0_i32_16 to %21 step %c1_i32  : i32 {
      %c1_i32_23 = arith.constant 1 : i32
      %27 = arith.muli %arg8, %c1_i32_23 : i32
      %c0_i32_24 = arith.constant 0 : i32
      %28 = arith.addi %c0_i32_24, %27 : i32
      %c0_25 = arith.constant 0 : index
      %c0_26 = arith.constant 0 : index
      %29 = vector.load %arg7[%c0_25, %c0_26] : memref<1x1xi32, #tpu.memory_space<vmem>>, vector<1x1xi32>
      %30 = vector.extract %29[0, 0] : i32 from vector<1x1xi32>
      %c384_i32_27 = arith.constant 384 : i32
      %31 = arith.cmpi slt, %30, %c384_i32_27 : i32
      %32 = arith.extui %31 : i1 to i32
      %c0_i32_28 = arith.constant 0 : i32
      %33 = arith.cmpi ne, %32, %c0_i32_28 : i32
      scf.if %33 {
        %c0_29 = arith.constant 0 : index
        %c0_30 = arith.constant 0 : index
        %34 = vector.load %arg6[%c0_29, %c0_30] : memref<8x1xi32, #tpu.memory_space<vmem>>, vector<8x1xi32>
        %c384_i32_31 = arith.constant 384 : i32
        %35 = vector.broadcast %c384_i32_31 : i32 to vector<8x1xi32>
        %36 = arith.subi %35, %34 : vector<8x1xi32>
        %c4_i32 = arith.constant 4 : i32
        %37 = vector.broadcast %c4_i32 : i32 to vector<8x1xi32>
        %38 = arith.maxsi %37, %36 : vector<8x1xi32>
        %39 = vector.broadcast %28 : i32 to vector<1x50xi32>
        %40 = arith.cmpi eq, %6, %39 : vector<1x50xi32>
        %cst = arith.constant 0.000000e+00 : f32
        %41 = vector.shape_cast %40 : vector<1x50xi1> to vector<1x50xi1>
        %42 = vector.broadcast %41 : vector<1x50xi1> to vector<40x50xi1>
        %43 = vector.broadcast %cst : f32 to vector<40x50xf32>
        %44 = arith.select %42, %5, %43 : vector<40x50xi1>, vector<40x50xf32>
        %cst_32 = arith.constant dense<0.000000e+00> : vector<40xf32>
        %45 = vector.multi_reduction <add>, %44, %cst_32 [1] : vector<40x50xf32> to vector<40xf32>
        %46 = vector.shape_cast %45 : vector<40xf32> to vector<40x1xf32>
        %47 = vector.extract_strided_slice %46 {offsets = [0, 0], sizes = [8, 1], strides = [1, 1]} : vector<40x1xf32> to vector<8x1xf32>
        %48 = vector.extract_strided_slice %46 {offsets = [8, 0], sizes = [8, 1], strides = [1, 1]} : vector<40x1xf32> to vector<8x1xf32>
        %49 = vector.extract_strided_slice %46 {offsets = [16, 0], sizes = [8, 1], strides = [1, 1]} : vector<40x1xf32> to vector<8x1xf32>
        %50 = vector.extract_strided_slice %46 {offsets = [24, 0], sizes = [8, 1], strides = [1, 1]} : vector<40x1xf32> to vector<8x1xf32>
        %51 = vector.extract_strided_slice %46 {offsets = [32, 0], sizes = [8, 1], strides = [1, 1]} : vector<40x1xf32> to vector<8x1xf32>
        %52 = vector.broadcast %3 : vector<1x128xi32> to vector<8x128xi32>
        %53 = vector.broadcast %38 : vector<8x1xi32> to vector<8x128xi32>
        %54 = arith.cmpi sle, %52, %53 : vector<8x128xi32>
        %55 = arith.extui %54 : vector<8x128xi1> to vector<8x128xi32>
        %cst_33 = arith.constant dense<0> : vector<8xi32>
        %56 = vector.multi_reduction <add>, %55, %cst_33 [1] : vector<8x128xi32> to vector<8xi32>
        %57 = vector.shape_cast %56 : vector<8xi32> to vector<8x1xi32>
        %c1_i32_34 = arith.constant 1 : i32
        %58 = vector.broadcast %c1_i32_34 : i32 to vector<8x1xi32>
        %59 = arith.maxsi %57, %58 : vector<8x1xi32>
        %60 = arith.muli %59, %59 : vector<8x1xi32>
        %61 = arith.sitofp %38 : vector<8x1xi32> to vector<8x1xf32>
        %62 = arith.sitofp %60 : vector<8x1xi32> to vector<8x1xf32>
        %63 = arith.divf %61, %62 : vector<8x1xf32>
        %64 = arith.fptosi %63 : vector<8x1xf32> to vector<8x1xi32>
        %65 = arith.muli %64, %60 : vector<8x1xi32>
        %66 = arith.subi %38, %65 : vector<8x1xi32>
        %67 = arith.cmpi sge, %66, %60 : vector<8x1xi32>
        %68 = arith.extui %67 : vector<8x1xi1> to vector<8x1xi32>
        %69 = arith.addi %64, %68 : vector<8x1xi32>
        %c0_i32_35 = arith.constant 0 : i32
        %70 = vector.broadcast %c0_i32_35 : i32 to vector<8x1xi32>
        %71 = arith.cmpi slt, %66, %70 : vector<8x1xi32>
        %72 = arith.extui %71 : vector<8x1xi1> to vector<8x1xi32>
        %73 = arith.subi %69, %72 : vector<8x1xi32>
        %74 = arith.sitofp %59 : vector<8x1xi32> to vector<8x1xf32>
        %c1_i32_36 = arith.constant 1 : i32
        %75 = vector.broadcast %c1_i32_36 : i32 to vector<8x1xi32>
        %76 = arith.maxsi %75, %73 : vector<8x1xi32>
        %77 = arith.mulf %74, %47 : vector<8x1xf32>
        %78 = arith.fptosi %77 : vector<8x1xf32> to vector<8x1xi32>
        %c1_i32_37 = arith.constant 1 : i32
        %79 = vector.broadcast %c1_i32_37 : i32 to vector<8x1xi32>
        %80 = arith.maxsi %79, %78 : vector<8x1xi32>
        %81 = arith.mulf %74, %48 : vector<8x1xf32>
        %82 = arith.fptosi %81 : vector<8x1xf32> to vector<8x1xi32>
        %c1_i32_38 = arith.constant 1 : i32
        %83 = vector.broadcast %c1_i32_38 : i32 to vector<8x1xi32>
        %84 = arith.maxsi %83, %82 : vector<8x1xi32>
        %c1_i32_39 = arith.constant 1 : i32
        %85 = vector.broadcast %c1_i32_39 : i32 to vector<8x1xi32>
        %86 = arith.maxsi %76, %85 : vector<8x1xi32>
        %c1_i32_40 = arith.constant 1 : i32
        %87 = vector.broadcast %c1_i32_40 : i32 to vector<8x1xi32>
        %88 = arith.maxsi %80, %87 : vector<8x1xi32>
        %c1_i32_41 = arith.constant 1 : i32
        %89 = vector.broadcast %c1_i32_41 : i32 to vector<8x1xi32>
        %90 = arith.maxsi %84, %89 : vector<8x1xi32>
        %c8_i32_42 = arith.constant 8 : i32
        %91 = vector.broadcast %c8_i32_42 : i32 to vector<8x1xi32>
        %92 = arith.minsi %86, %91 : vector<8x1xi32>
        %c8_i32_43 = arith.constant 8 : i32
        %93 = vector.broadcast %c8_i32_43 : i32 to vector<8x1xi32>
        %94 = arith.minsi %88, %93 : vector<8x1xi32>
        %c8_i32_44 = arith.constant 8 : i32
        %95 = vector.broadcast %c8_i32_44 : i32 to vector<8x1xi32>
        %96 = arith.minsi %90, %95 : vector<8x1xi32>
        %c8_i32_45 = arith.constant 8 : i32
        %97 = vector.broadcast %c8_i32_45 : i32 to vector<8x1xi32>
        %98 = arith.subi %97, %92 : vector<8x1xi32>
        %c1_i32_46 = arith.constant 1 : i32
        %99 = vector.broadcast %c1_i32_46 : i32 to vector<8x1xi32>
        %100 = arith.addi %98, %99 : vector<8x1xi32>
        %c8_i32_47 = arith.constant 8 : i32
        %101 = vector.broadcast %c8_i32_47 : i32 to vector<8x1xi32>
        %102 = arith.subi %101, %94 : vector<8x1xi32>
        %c1_i32_48 = arith.constant 1 : i32
        %103 = vector.broadcast %c1_i32_48 : i32 to vector<8x1xi32>
        %104 = arith.addi %102, %103 : vector<8x1xi32>
        %c8_i32_49 = arith.constant 8 : i32
        %105 = vector.broadcast %c8_i32_49 : i32 to vector<8x1xi32>
        %106 = arith.subi %105, %96 : vector<8x1xi32>
        %c1_i32_50 = arith.constant 1 : i32
        %107 = vector.broadcast %c1_i32_50 : i32 to vector<8x1xi32>
        %108 = arith.addi %106, %107 : vector<8x1xi32>
        %109 = arith.sitofp %100 : vector<8x1xi32> to vector<8x1xf32>
        %110 = arith.mulf %49, %109 : vector<8x1xf32>
        %111 = arith.fptosi %110 : vector<8x1xf32> to vector<8x1xi32>
        %c1_i32_51 = arith.constant 1 : i32
        %112 = vector.broadcast %c1_i32_51 : i32 to vector<8x1xi32>
        %113 = arith.subi %100, %112 : vector<8x1xi32>
        %114 = arith.minsi %111, %113 : vector<8x1xi32>
        %115 = arith.sitofp %104 : vector<8x1xi32> to vector<8x1xf32>
        %116 = arith.mulf %50, %115 : vector<8x1xf32>
        %117 = arith.fptosi %116 : vector<8x1xf32> to vector<8x1xi32>
        %c1_i32_52 = arith.constant 1 : i32
        %118 = vector.broadcast %c1_i32_52 : i32 to vector<8x1xi32>
        %119 = arith.subi %104, %118 : vector<8x1xi32>
        %120 = arith.minsi %117, %119 : vector<8x1xi32>
        %121 = arith.sitofp %108 : vector<8x1xi32> to vector<8x1xf32>
        %122 = arith.mulf %51, %121 : vector<8x1xf32>
        %123 = arith.fptosi %122 : vector<8x1xf32> to vector<8x1xi32>
        %c1_i32_53 = arith.constant 1 : i32
        %124 = vector.broadcast %c1_i32_53 : i32 to vector<8x1xi32>
        %125 = arith.subi %108, %124 : vector<8x1xi32>
        %126 = arith.minsi %123, %125 : vector<8x1xi32>
        %127 = vector.broadcast %0 : vector<1x512xi32> to vector<8x512xi32>
        %128 = vector.broadcast %114 : vector<8x1xi32> to vector<8x512xi32>
        %129 = arith.cmpi sge, %127, %128 : vector<8x512xi32>
        %130 = arith.addi %114, %92 : vector<8x1xi32>
        %131 = vector.broadcast %0 : vector<1x512xi32> to vector<8x512xi32>
        %132 = vector.broadcast %130 : vector<8x1xi32> to vector<8x512xi32>
        %133 = arith.cmpi slt, %131, %132 : vector<8x512xi32>
        %134 = arith.andi %129, %133 : vector<8x512xi1>
        %135 = vector.broadcast %1 : vector<1x512xi32> to vector<8x512xi32>
        %136 = vector.broadcast %120 : vector<8x1xi32> to vector<8x512xi32>
        %137 = arith.cmpi sge, %135, %136 : vector<8x512xi32>
        %138 = arith.andi %134, %137 : vector<8x512xi1>
        %139 = arith.addi %120, %94 : vector<8x1xi32>
        %140 = vector.broadcast %1 : vector<1x512xi32> to vector<8x512xi32>
        %141 = vector.broadcast %139 : vector<8x1xi32> to vector<8x512xi32>
        %142 = arith.cmpi slt, %140, %141 : vector<8x512xi32>
        %143 = arith.andi %138, %142 : vector<8x512xi1>
        %144 = vector.broadcast %2 : vector<1x512xi32> to vector<8x512xi32>
        %145 = vector.broadcast %126 : vector<8x1xi32> to vector<8x512xi32>
        %146 = arith.cmpi sge, %144, %145 : vector<8x512xi32>
        %147 = arith.andi %143, %146 : vector<8x512xi1>
        %148 = arith.addi %126, %96 : vector<8x1xi32>
        %149 = vector.broadcast %2 : vector<1x512xi32> to vector<8x512xi32>
        %150 = vector.broadcast %148 : vector<8x1xi32> to vector<8x512xi32>
        %151 = arith.cmpi slt, %149, %150 : vector<8x512xi32>
        %152 = arith.andi %147, %151 : vector<8x512xi1>
        %c0_54 = arith.constant 0 : index
        %c0_55 = arith.constant 0 : index
        %153 = vector.load %arg5[%c0_54, %c0_55] : memref<8x512xi32, #tpu.memory_space<vmem>>, vector<8x512xi32>
        %c0_i32_56 = arith.constant 0 : i32
        %154 = vector.broadcast %c0_i32_56 : i32 to vector<8x512xi32>
        %155 = arith.cmpi eq, %153, %154 : vector<8x512xi32>
        %156 = arith.andi %152, %155 : vector<8x512xi1>
        %157 = arith.extui %156 : vector<8x512xi1> to vector<8x512xi32>
        %cst_57 = arith.constant dense<0> : vector<8xi32>
        %158 = vector.multi_reduction <add>, %157, %cst_57 [1] : vector<8x512xi32> to vector<8xi32>
        %159 = vector.shape_cast %158 : vector<8xi32> to vector<8x1xi32>
        %c0_i32_58 = arith.constant 0 : i32
        %160 = vector.broadcast %c0_i32_58 : i32 to vector<8x1xi32>
        %161 = arith.cmpi sgt, %159, %160 : vector<8x1xi32>
        %c384_i32_59 = arith.constant 384 : i32
        %162 = vector.broadcast %c384_i32_59 : i32 to vector<8x1xi32>
        %163 = arith.cmpi slt, %34, %162 : vector<8x1xi32>
        %164 = arith.andi %163, %161 : vector<8x1xi1>
        %165 = vector.broadcast %164 : vector<8x1xi1> to vector<8x512xi1>
        %166 = arith.andi %152, %165 : vector<8x512xi1>
        %167 = arith.extui %166 : vector<8x512xi1> to vector<8x512xi32>
        %168 = arith.ori %153, %167 : vector<8x512xi32>
        %c0_60 = arith.constant 0 : index
        %c0_61 = arith.constant 0 : index
        %169 = vector.load %arg5[%c0_60, %c0_61] : memref<8x512xi32, #tpu.memory_space<vmem>>, vector<8x512xi32>
        tpu.vector_store %arg5[%c0_60, %c0_61], %168 {strides = array<i32>} : memref<8x512xi32, #tpu.memory_space<vmem>>, vector<8x512xi32>,
        %170 = arith.muli %92, %94 : vector<8x1xi32>
        %171 = arith.muli %170, %96 : vector<8x1xi32>
        %c0_i32_62 = arith.constant 0 : i32
        %172 = vector.broadcast %c0_i32_62 : i32 to vector<8x1xi32>
        %173 = arith.select %164, %171, %172 : vector<8x1xi1>, vector<8x1xi32>
        %174 = arith.addi %34, %173 : vector<8x1xi32>
        %c0_63 = arith.constant 0 : index
        %c0_64 = arith.constant 0 : index
        %175 = vector.load %arg6[%c0_63, %c0_64] : memref<8x1xi32, #tpu.memory_space<vmem>>, vector<8x1xi32>
        tpu.vector_store %arg6[%c0_63, %c0_64], %174 {strides = array<i32>} : memref<8x1xi32, #tpu.memory_space<vmem>>, vector<8x1xi32>,
        %cst_65 = arith.constant dense<2147483647> : vector<1xi32>
        %176 = vector.multi_reduction <minsi>, %174, %cst_65 [0] : vector<8x1xi32> to vector<1xi32>
        %177 = vector.shape_cast %176 : vector<1xi32> to vector<1x1xi32>
        %c0_66 = arith.constant 0 : index
        %c0_67 = arith.constant 0 : index
        %178 = vector.load %arg7[%c0_66, %c0_67] : memref<1x1xi32, #tpu.memory_space<vmem>>, vector<1x1xi32>
        tpu.vector_store %arg7[%c0_66, %c0_67], %177 {strides = array<i32>} : memref<1x1xi32, #tpu.memory_space<vmem>>, vector<1x1xi32>,
      } else {
      }
    }
    %c50_i32_17 = arith.constant 50 : i32
    %c0_18 = arith.constant 0 : index
    %c0_19 = arith.constant 0 : index
    %22 = vector.load %arg5[%c0_18, %c0_19] : memref<8x512xi32, #tpu.memory_space<vmem>>, vector<8x512xi32>
    %23 = arith.trunci %22 : vector<8x512xi32> to vector<8x512xi8>
    %c0_20 = arith.constant 0 : index
    %c0_21 = arith.constant 0 : index
    %c0_22 = arith.constant 0 : index
    %24 = vector.load %arg4[%c0_20, %c0_21, %c0_22] : memref<1x8x512xi8, #tpu.memory_space<vmem>>, vector<1x8x512xi8>
    %25 = vector.shape_cast %24 : vector<1x8x512xi8> to vector<8x512xi8>
    %26 = vector.shape_cast %23 : vector<8x512xi8> to vector<1x8x512xi8>
    tpu.vector_store %arg4[%c0_20, %c0_21, %c0_22], %26 {strides = array<i32>} : memref<1x8x512xi8, #tpu.memory_space<vmem>>, vector<1x8x512xi8>,
    return
  }
  func.func @transform_0(%arg0: i32) -> (i32, i32) {
    %c0_i32 = arith.constant 0 : i32
    %c0_i32_0 = arith.constant 0 : i32
    %c0_i32_1 = arith.constant 0 : i32
    return %c0_i32, %c0_i32_0 : i32, i32
  }
  func.func @transform_1(%arg0: i32) -> (i32, i32) {
    %c0_i32 = arith.constant 0 : i32
    %c0_i32_0 = arith.constant 0 : i32
    %c0_i32_1 = arith.constant 0 : i32
    return %c0_i32, %c0_i32_0 : i32, i32
  }
  func.func @transform_2(%arg0: i32) -> (i32, i32, i32) {
    %c0_i32 = arith.constant 0 : i32
    %c0_i32_0 = arith.constant 0 : i32
    %c0_i32_1 = arith.constant 0 : i32
    return %arg0, %c0_i32, %c0_i32_0 : i32, i32, i32
  }
  func.func @transform_3(%arg0: i32) -> (i32, i32, i32) {
    %c0_i32 = arith.constant 0 : i32
    %c0_i32_0 = arith.constant 0 : i32
    %c0_i32_1 = arith.constant 0 : i32
    return %arg0, %c0_i32, %c0_i32_0 : i32, i32, i32
  }
}

</mosaic_0001>

<llo_original>
// kernel: tpu_custom_call.1
$region0: #{tpu_custom_call.1}
  #allocation0 [shape = 'u32[]', space=smem, size = 0x4, offset = 0x4, fixed_abs, tag = 'smem constant byte address 0x4 - core index']
  #allocation1 [shape = 'u32[72,128]{1,0:T(1,128)}', space=vmem, size = 0x9000, scoped, tag = 'internal scratch']
  #allocation2 [shape = 's32[8,512]{1,0:T(8,128)}', space=vmem, size = 0x4000, scoped, tag = 'scratch operand']
  #allocation3 [shape = 's32[8,1]{1,0:T(8,128)}', space=vmem, size = 0x1000, scoped, tag = 'scratch operand']
  #allocation4 [shape = 's32[1,1]{1,0:T(1,128)}', space=vmem, size = 0x200, scoped, tag = 'scratch operand']
  %s0 = inlined_call_operand.hbm [shape: s32[3,512], index: 0, kind: input, shape index: {}]
  %s1 = inlined_call_operand.hbm [shape: s32[1,128], index: 1, kind: input, shape index: {}]
  %s2 = inlined_call_operand.hbm [shape: f32[1,40,50], index: 2, kind: input, shape index: {}]
  %s3 = inlined_call_operand.hbm [shape: s8[1,8,512], index: 3, kind: output, shape index: {}]
  %s4 = sld [smem:[#allocation0]]
  $region45: #{tpu_custom_call.1} parent=0
    _
  %s6 = ssub.s32 1, %s4
  %s7 = scalar_select 0, %s6, %s4
  $region1: #{tpu_custom_call.1} parent=0
    #allocation5 [shape = 'u8[8192]{0}', space=vmem, size = 0x2000, scoped, tag = 'input window, operand 0, single buffered']
    #allocation6 [shape = 's32[1]{0}', space=sflag, size = 0x4, scoped, tag = 'scoped memory for tpu_custom_call.1']
    #allocation7 [shape = 's32[1]{0}', space=sflag, size = 0x4, scoped, tag = 'scoped memory for tpu_custom_call.1']
    #allocation8 [shape = 'u8[512]{0}', space=vmem, size = 0x400, scoped, tag = 'input window, operand 1, single buffered']
    #allocation9 [shape = 's32[1]{0}', space=sflag, size = 0x4, scoped, tag = 'scoped memory for tpu_custom_call.1']
    #allocation10 [shape = 'u8[20480]{0}', space=vmem, size = 0x5000, scoped, tag = 'input window, operand 2, single buffered']
    #allocation11 [shape = 'u8[4096]{0}', space=vmem, size = 0x1000, scoped, tag = 'output window, operand 0, single buffered']
    %8 = vsyncpa [#allocation6], 0
    %9 = vsyncpa [#allocation9], 0
    %10 = vsyncpa [#allocation7], 0
    // Predicated region
    $region2: #{tpu_custom_call.1} parent=1 // pred_check
      _
    $region3: #{tpu_custom_call.1} parent=1 // pred_check_branch
      %12 = sbr.rel (0) target = $region5
    $region4: #{tpu_custom_call.1} parent=1 // pred_region
      %14 = vsyncadd [#allocation6], 0
      %s16 = sshll.u32 %s0, 4
      %s17 = int_to_ptr.hbm [resolvable:$true] %s16
      %s18 = sshll.u32 [#allocation5], 4
      %s19 = int_to_ptr.vmem [resolvable:$true] %s18
      %21 = dma.hbm_to_vmem [thread:$0]  %s17, 256, %s19, [#allocation6]
    $region5: #{tpu_custom_call.1} parent=1 // pred_fallthru
      _
    // Predicated region
    $region6: #{tpu_custom_call.1} parent=1 // pred_check
      _
    $region7: #{tpu_custom_call.1} parent=1 // pred_check_branch
      %23 = sbr.rel (0) target = $region9
    $region8: #{tpu_custom_call.1} parent=1 // pred_region
      %25 = vsyncadd [#allocation9], 0
      %s27 = sshll.u32 %s1, 4
      %s28 = int_to_ptr.hbm [resolvable:$true] %s27
      %s29 = sshll.u32 [#allocation8], 4
      %s30 = int_to_ptr.vmem [resolvable:$true] %s29
      %32 = dma.hbm_to_vmem [thread:$0]  %s28, 16, %s30, [#allocation9]
    $region9: #{tpu_custom_call.1} parent=1 // pred_fallthru
      _
    // Predicated region
    $region10: #{tpu_custom_call.1} parent=1 // pred_check
      _
    $region11: #{tpu_custom_call.1} parent=1 // pred_check_branch
      %34 = sbr.rel (0) target = $region13
    $region12: #{tpu_custom_call.1} parent=1 // pred_region
      %36 = vsyncadd [#allocation9], 0
      %s37 = sshll.u32 %s2, 4
      %s38 = int_to_ptr.hbm [resolvable:$true] %s37
      %s39 = sshll.u32 [#allocation10], 4
      %s40 = int_to_ptr.vmem [resolvable:$true] %s39
      %45 = dma.hbm_to_vmem [thread:$0]  %s38, 640, %s40, [#allocation9], 128, 128, 8
    $region13: #{tpu_custom_call.1} parent=1 // pred_fallthru
      _
    // Predicated region
    $region14: #{tpu_custom_call.1} parent=1 // pred_check
      _
    $region15: #{tpu_custom_call.1} parent=1 // pred_check_branch
      %47 = sbr.rel (0) target = $region17
    $region16: #{tpu_custom_call.1} parent=1 // pred_region
      %49 = dma.done [#allocation6], 256
    $region17: #{tpu_custom_call.1} parent=1 // pred_fallthru
      _
    // Predicated region
    $region18: #{tpu_custom_call.1} parent=1 // pred_check
      _
    $region19: #{tpu_custom_call.1} parent=1 // pred_check_branch
      %51 = sbr.rel (0) target = $region21
    $region20: #{tpu_custom_call.1} parent=1 // pred_region
      %53 = dma.done [#allocation9], 16
    $region21: #{tpu_custom_call.1} parent=1 // pred_fallthru
      _
    // Predicated region
    $region22: #{tpu_custom_call.1} parent=1 // pred_check
      _
    $region23: #{tpu_custom_call.1} parent=1 // pred_check_branch
      %55 = sbr.rel (0) target = $region25
    $region24: #{tpu_custom_call.1} parent=1 // pred_region
      %57 = dma.done [#allocation9], 640
    $region25: #{tpu_custom_call.1} parent=1 // pred_fallthru
      _
    %v58 = vld [vmem:[#allocation5] ss:$4 sm:$0xf]
    %s59 = scalar_lea.vmem [#allocation5], 1
    %v60 = vld [vmem:[%s59] ss:$4 sm:$0xf]
    %s61 = scalar_lea.vmem [#allocation5], 2
    %v62 = vld [vmem:[%s61] ss:$4 sm:$0xf]
    %v63 = vld [vmem:[#allocation8] sm:$0x1]
    %v64 = vld [vmem:[#allocation10] sm:$0xff]
    %v65 = vld [vmem:[#allocation10 + $0x8] sm:$0xff]
    %v66 = vld [vmem:[#allocation10 + $0x10] sm:$0xff]
    %v67 = vld [vmem:[#allocation10 + $0x18] sm:$0xff]
    %v68 = vld [vmem:[#allocation10 + $0x20] sm:$0xff]
    %v69 = vlaneseq
    %v70 = vand.u32 %v69, 127
    %v71 = vlaneseq
    %v72 = vshrl.u32 %v71, 7
    %s73 = smul.u32 0, 8
    %v74 = vstv %s73
    %v75 = vadd.s32 %v74, %v72
    %vm76 = vcmp.ge.s32.totalorder %v75, 2
    %77 = vst [vmem:[#allocation2] sm:$0xff] 0
    %78 = vst [vmem:[#allocation2 + $0x8] sm:$0xff] 0
    %79 = vst [vmem:[#allocation2 + $0x10] sm:$0xff] 0
    %80 = vst [vmem:[#allocation2 + $0x18] sm:$0xff] 0
    %v81 = vsel %vm76, 384, 0
    %vm82 = vcmask 7168
    %83 = vst.msk [vmem:[#allocation3] sm:$0xff] %vm82, %v81
    %vm84 = vcmask 0
    %85 = vst.msk [vmem:[#allocation4] sm:$0x1] %vm84, 0
    loop: start=0, step=1, limit=50
    $region26: #{tpu_custom_call.1} parent=1 // loop_pre_header
      _
    $region27: #{tpu_custom_call.1} parent=1 // loop_header
      %s87 = sphi 0, %s91
      %p88 = scmp.ge.s32.totalorder %s87, 50
    $region28: #{tpu_custom_call.1} parent=1 // loop_header_branch
      %90 = sbr.rel (%p88) target = $region32
    $region29: #{tpu_custom_call.1} parent=1 // loop_body
      %v92 = vld [vmem:[#allocation4] sm:$0x1]
      %s93 = vtos %v92
      %p94 = scmp.lt.s32.totalorder %s93, 384
      // Predicated region
      $region33: #{tpu_custom_call.1} parent=29 // pred_check
        %p95 = pneg %p94
      $region34: #{tpu_custom_call.1} parent=29 // pred_check_branch
        %97 = sbr.rel (%p95) target = $region36
      $region35: #{tpu_custom_call.1} parent=29 // pred_region
        %v98 = vld [vmem:[#allocation3] sm:$0xff]
        %v99 = vsub.s32 384, %v98
        %vm100 = vcmp.gt.s32.totalorder %v99, 4
        %v101 = vsel %vm100, %v99, 4
        %v102 = vstv %s87
        %vm103 = vcmp.eq.s32.totalorder %v70, %v102
        %v104 = vsel %vm103, 1, 0
        %vm105 = vcmp.eq.s32.totalorder %v104, 1
        %v106 = vsel %vm105, %v64, 0.0
        %v107 = vsel %vm105, %v65, 0.0
        %v108 = vsel %vm105, %v66, 0.0
        %v109 = vsel %vm105, %v67, 0.0
        %v110 = vsel %vm105, %v68, 0.0
        %vm111 = vcmask 408576
        %v112 = vsel %vm111, %v106, 0.0
        %113 = vadd.xlane.f32.xlu0 %v112
        %v114 = vpop.xlane.xlu0 %113
        %v115 = vsel %vm111, %v107, 0.0
        %116 = vadd.xlane.f32.xlu0 %v115
        %v117 = vpop.xlane.xlu0 %116
        %v118 = vsel %vm111, %v108, 0.0
        %119 = vadd.xlane.f32.xlu0 %v118
        %v120 = vpop.xlane.xlu0 %119
        %v121 = vsel %vm111, %v109, 0.0
        %122 = vadd.xlane.f32.xlu0 %v121
        %v123 = vpop.xlane.xlu0 %122
        %v124 = vsel %vm111, %v110, 0.0
        %125 = vadd.xlane.f32.xlu0 %v124
        %v126 = vpop.xlane.xlu0 %125
        %v127 = vperm.slane %v63, 0
        %128 = vset.pattern.permute.xlu0 0
        %129 = vperm.xlu0 %128, %v101
        %v130 = vpop.permute.xlu0 %129
        %vm131 = vcmp.le.s32.totalorder %v127, %v130
        %v132 = vsel %vm131, 1, 0
        %v133 = vand.u32 %v132, 65535
        %v134 = vshrl.u32 %v132, 16
        %v135 = vcvt.s32.f32 %v133
        %v136 = vcvt.s32.f32 %v134
        %137 = vadd.xlane.f32.xlu0 %v135
        %v138 = vpop.xlane.xlu0 %137
        %139 = vadd.xlane.f32.xlu0 %v136
        %v140 = vpop.xlane.xlu0 %139
        %v141 = vcvt.f32.s32 %v138
        %v142 = vcvt.f32.s32 %v140
        %v143 = vshll.u32 %v142, 16
        %v144 = vadd.s32 %v143, %v141
        %vm145 = vcmp.gt.s32.totalorder %v144, 1
        %v146 = vsel %vm145, %v144, 1
        %v147 = vmul.u32 %v146, %v146
        %v148 = vcvt.s32.f32 %v101
        %v149 = vcvt.s32.f32 %v147
        %v150 = vrcp.pop %v149
        %v151 = vmul.f32 %v149, %v150
        %v152 = vsub.f32 1.0, %v151
        %v153 = vmul.f32 %v150, %v152
        %v154 = vadd.f32 %v150, %v153
        %vm155 = vweird.f32 %v149
        %vm156 = vweird.f32 %v150
        %vm157 = vmor %vm155, %vm156
        %v158 = vsel %vm157, %v150, %v154
        %v159 = vand.u32 2147483647, %v149
        %vm160 = vcmp.eq.f32.partialorder %v159, 8.507059e+37
        %v161 = vand.u32 %v149, 2147483648
        %v162 = vor.u32 1.1754944e-38, %v161
        %v163 = vsel %vm160, %v162, %v158
        %v164 = vmul.f32 %v148, %v163
        %v165 = vcvt.f32.s32.to.zero.pseudo %v164
        %v166 = vmul.u32 %v165, %v147
        %v167 = vsub.s32 %v101, %v166
        %vm168 = vcmp.ge.s32.totalorder %v167, %v147
        %v169 = vsel %vm168, 1, 0
        %v170 = vadd.s32 %v165, %v169
        %vm171 = vcmp.lt.s32.totalorder %v167, 0
        %v172 = vsel %vm171, 1, 0
        %v173 = vsub.s32 %v170, %v172
        %v174 = vcvt.s32.f32 %v146
        %vm175 = vcmp.gt.s32.totalorder %v173, 1
        %v176 = vsel %vm175, %v173, 1
        %v177 = vmul.f32 %v174, %v114
        %v178 = vcvt.f32.s32.to.zero.pseudo %v177
        %vm179 = vcmp.gt.s32.totalorder %v178, 1
        %v180 = vsel %vm179, %v178, 1
        %v181 = vmul.f32 %v174, %v117
        %v182 = vcvt.f32.s32.to.zero.pseudo %v181
        %vm183 = vcmp.gt.s32.totalorder %v182, 1
        %v184 = vsel %vm183, %v182, 1
        %vm185 = vcmp.gt.s32.totalorder %v176, 1
        %v186 = vsel %vm185, %v176, 1
        %vm187 = vcmp.gt.s32.totalorder %v180, 1
        %v188 = vsel %vm187, %v180, 1
        %vm189 = vcmp.gt.s32.totalorder %v184, 1
        %v190 = vsel %vm189, %v184, 1
        %vm191 = vcmp.lt.s32.totalorder %v186, 8
        %v192 = vsel %vm191, %v186, 8
        %vm193 = vcmp.lt.s32.totalorder %v188, 8
        %v194 = vsel %vm193, %v188, 8
        %vm195 = vcmp.lt.s32.totalorder %v190, 8
        %v196 = vsel %vm195, %v190, 8
        %v197 = vsub.s32 8, %v192
        %v198 = vadd.s32 %v197, 1
        %v199 = vsub.s32 8, %v194
        %v200 = vadd.s32 %v199, 1
        %v201 = vsub.s32 8, %v196
        %v202 = vadd.s32 %v201, 1
        %v203 = vcvt.s32.f32 %v198
        %v204 = vmul.f32 %v120, %v203
        %v205 = vcvt.f32.s32.to.zero.pseudo %v204
        %vm206 = vcmp.lt.s32.totalorder %v205, %v197
        %v207 = vsel %vm206, %v205, %v197
        %v208 = vcvt.s32.f32 %v200
        %v209 = vmul.f32 %v123, %v208
        %v210 = vcvt.f32.s32.to.zero.pseudo %v209
        %vm211 = vcmp.lt.s32.totalorder %v210, %v199
        %v212 = vsel %vm211, %v210, %v199
        %v213 = vcvt.s32.f32 %v202
        %v214 = vmul.f32 %v126, %v213
        %v215 = vcvt.f32.s32.to.zero.pseudo %v214
        %vm216 = vcmp.lt.s32.totalorder %v215, %v201
        %v217 = vsel %vm216, %v215, %v201
        %v218 = vperm.slane %v58, 0
        %v219 = vperm.slane %v58, 1
        %v220 = vperm.slane %v58, 2
        %v221 = vperm.slane %v58, 3
        %222 = vset.pattern.permute.xlu0 0
        %223 = vperm.xlu0 %222, %v207
        %v224 = vpop.permute.xlu0 %223
        %vm225 = vcmp.ge.s32.totalorder %v218, %v224
        %vm226 = vcmp.ge.s32.totalorder %v219, %v224
        %vm227 = vcmp.ge.s32.totalorder %v220, %v224
        %vm228 = vcmp.ge.s32.totalorder %v221, %v224
        %v229 = vadd.s32 %v207, %v192
        %230 = vset.pattern.permute.xlu0 0
        %231 = vperm.xlu0 %230, %v229
        %v232 = vpop.permute.xlu0 %231
        %vm233 = vcmp.lt.s32.totalorder %v218, %v232
        %vm234 = vcmp.lt.s32.totalorder %v219, %v232
        %vm235 = vcmp.lt.s32.totalorder %v220, %v232
        %vm236 = vcmp.lt.s32.totalorder %v221, %v232
        %vm237 = vmand %vm225, %vm233
        %vm238 = vmand %vm226, %vm234
        %vm239 = vmand %vm227, %vm235
        %vm240 = vmand %vm228, %vm236
        %v241 = vperm.slane %v60, 0
        %v242 = vperm.slane %v60, 1
        %v243 = vperm.slane %v60, 2
        %v244 = vperm.slane %v60, 3
        %vm245 = vcmp.ge.s32.totalorder %v241, %v212
        %vm246 = vcmp.ge.s32.totalorder %v242, %v212
        %vm247 = vcmp.ge.s32.totalorder %v243, %v212
        %vm248 = vcmp.ge.s32.totalorder %v244, %v212
        %vm249 = vmand %vm237, %vm245
        %vm250 = vmand %vm238, %vm246
        %vm251 = vmand %vm239, %vm247
        %vm252 = vmand %vm240, %vm248
        %v253 = vadd.s32 %v212, %v194
        %vm254 = vcmp.lt.s32.totalorder %v241, %v253
        %vm255 = vcmp.lt.s32.totalorder %v242, %v253
        %vm256 = vcmp.lt.s32.totalorder %v243, %v253
        %vm257 = vcmp.lt.s32.totalorder %v244, %v253
        %vm258 = vmand %vm249, %vm254
        %vm259 = vmand %vm250, %vm255
        %vm260 = vmand %vm251, %vm256
        %vm261 = vmand %vm252, %vm257
        %v262 = vperm.slane %v62, 0
        %v263 = vperm.slane %v62, 1
        %v264 = vperm.slane %v62, 2
        %v265 = vperm.slane %v62, 3
        %vm266 = vcmp.ge.s32.totalorder %v262, %v217
        %vm267 = vcmp.ge.s32.totalorder %v263, %v217
        %vm268 = vcmp.ge.s32.totalorder %v264, %v217
        %vm269 = vcmp.ge.s32.totalorder %v265, %v217
        %vm270 = vmand %vm258, %vm266
        %vm271 = vmand %vm259, %vm267
        %vm272 = vmand %vm260, %vm268
        %vm273 = vmand %vm261, %vm269
        %v274 = vadd.s32 %v217, %v196
        %vm275 = vcmp.lt.s32.totalorder %v262, %v274
        %vm276 = vcmp.lt.s32.totalorder %v263, %v274
        %vm277 = vcmp.lt.s32.totalorder %v264, %v274
        %vm278 = vcmp.lt.s32.totalorder %v265, %v274
        %vm279 = vmand %vm270, %vm275
        %vm280 = vmand %vm271, %vm276
        %vm281 = vmand %vm272, %vm277
        %vm282 = vmand %vm273, %vm278
        %v283 = vld [vmem:[#allocation2] sm:$0xff]
        %v284 = vld [vmem:[#allocation2 + $0x8] sm:$0xff]
        %v285 = vld [vmem:[#allocation2 + $0x10] sm:$0xff]
        %v286 = vld [vmem:[#allocation2 + $0x18] sm:$0xff]
        %vm287 = vcmp.eq.s32.totalorder %v283, 0
        %vm288 = vcmp.eq.s32.totalorder %v284, 0
        %vm289 = vcmp.eq.s32.totalorder %v285, 0
        %vm290 = vcmp.eq.s32.totalorder %v286, 0
        %vm291 = vmand %vm279, %vm287
        %vm292 = vmand %vm280, %vm288
        %vm293 = vmand %vm281, %vm289
        %vm294 = vmand %vm282, %vm290
        %v295 = vsel %vm291, 1, 0
        %v296 = vsel %vm292, 1, 0
        %v297 = vsel %vm293, 1, 0
        %v298 = vsel %vm294, 1, 0
        %v299 = vadd.s32 %v295, %v296
        %v300 = vadd.s32 %v297, %v298
        %v301 = vadd.s32 %v299, %v300
        %v302 = vand.u32 %v301, 65535
        %v303 = vshrl.u32 %v301, 16
        %v304 = vcvt.s32.f32 %v302
        %v305 = vcvt.s32.f32 %v303
        %306 = vadd.xlane.f32.xlu0 %v304
        %v307 = vpop.xlane.xlu0 %306
        %308 = vadd.xlane.f32.xlu0 %v305
        %v309 = vpop.xlane.xlu0 %308
        %v310 = vcvt.f32.s32 %v307
        %v311 = vcvt.f32.s32 %v309
        %v312 = vshll.u32 %v311, 16
        %v313 = vadd.s32 %v312, %v310
        %vm314 = vcmp.gt.s32.totalorder %v313, 0
        %vm315 = vcmp.lt.s32.totalorder %v98, 384
        %vm316 = vmand %vm315, %vm314
        %v317 = vsel %vm316, 1, 0
        %318 = vset.pattern.permute.xlu0 0
        %319 = vperm.xlu0 %318, %v317
        %v320 = vpop.permute.xlu0 %319
        %vm321 = vcmp.eq.s32.totalorder %v320, 1
        %vm322 = vmand %vm279, %vm321
        %vm323 = vmand %vm280, %vm321
        %vm324 = vmand %vm281, %vm321
        %vm325 = vmand %vm282, %vm321
        %v326 = vsel %vm322, 1, 0
        %v327 = vsel %vm323, 1, 0
        %v328 = vsel %vm324, 1, 0
        %v329 = vsel %vm325, 1, 0
        %v330 = vor.u32 %v283, %v326
        %v331 = vor.u32 %v284, %v327
        %v332 = vor.u32 %v285, %v328
        %v333 = vor.u32 %v286, %v329
        %334 = vst [vmem:[#allocation2] sm:$0xff] %v330
        %335 = vst [vmem:[#allocation2 + $0x8] sm:$0xff] %v331
        %336 = vst [vmem:[#allocation2 + $0x10] sm:$0xff] %v332
        %337 = vst [vmem:[#allocation2 + $0x18] sm:$0xff] %v333
        %v338 = vmul.u32 %v192, %v194
        %v339 = vmul.u32 %v338, %v196
        %v340 = vsel %vm316, %v339, 0
        %v341 = vadd.s32 %v98, %v340
        %342 = vst.msk [vmem:[#allocation3] sm:$0xff] %vm82, %v341
        %v343 = vsel %vm82, %v341, 2147483647
        %v344 = vrot.slane %v343, 4
        %vm345 = vcmp.lt.s32.totalorder %v343, %v344
        %v346 = vsel %vm345, %v343, %v344
        %v347 = vrot.slane %v346, 2
        %vm348 = vcmp.lt.s32.totalorder %v346, %v347
        %v349 = vsel %vm348, %v346, %v347
        %v350 = vrot.slane %v349, 1
        %vm351 = vcmp.lt.s32.totalorder %v349, %v350
        %v352 = vsel %vm351, %v349, %v350
        %353 = vst.msk [vmem:[#allocation4] sm:$0x1] %vm84, %v352
      $region36: #{tpu_custom_call.1} parent=29 // pred_fallthru
        _
    $region30: #{tpu_custom_call.1} parent=1 // loop_footer
      %s91 = sadd.s32 1, %s87
    $region31: #{tpu_custom_call.1} parent=1 // loop_footer_branch
      %86 = sbr.rel target = $region27
    $region32: #{tpu_custom_call.1} parent=1 // loop_exit
      _
    %v354 = vld [vmem:[#allocation2] sm:$0xff]
    %v355 = vld [vmem:[#allocation2 + $0x8] sm:$0xff]
    %v356 = vld [vmem:[#allocation2 + $0x10] sm:$0xff]
    %v357 = vld [vmem:[#allocation2 + $0x18] sm:$0xff]
    %v358 = vpack.c.b16 %v355, %v354
    %v359 = vpack.c.b16 %v357, %v356
    %v360 = vpack.c.b8 %v359, %v358
    %361 = vst [vmem:[#allocation11] sm:$0xff] %v360
    // Predicated region
    $region37: #{tpu_custom_call.1} parent=1 // pred_check
      _
    $region38: #{tpu_custom_call.1} parent=1 // pred_check_branch
      %363 = sbr.rel (0) target = $region40
    $region39: #{tpu_custom_call.1} parent=1 // pred_region
      %365 = vsyncadd [#allocation7], 0
      %s367 = sshll.u32 [#allocation11], 4
      %s368 = int_to_ptr.vmem [resolvable:$true] %s367
      %s369 = sshll.u32 %s3, 4
      %s370 = int_to_ptr.hbm [resolvable:$true] %s369
      %372 = dma.vmem_to_hbm [thread:$0]  %s368, 128, %s370, [#allocation7]
    $region40: #{tpu_custom_call.1} parent=1 // pred_fallthru
      _
    // Predicated region
    $region41: #{tpu_custom_call.1} parent=1 // pred_check
      _
    $region42: #{tpu_custom_call.1} parent=1 // pred_check_branch
      %374 = sbr.rel (0) target = $region44
    $region43: #{tpu_custom_call.1} parent=1 // pred_region
      %376 = dma.done [#allocation7], 128
    $region44: #{tpu_custom_call.1} parent=1 // pred_fallthru
      _
    %377 = vsyncpa [#allocation6], 1
    %378 = vsyncpa [#allocation9], 1
    %379 = vsyncpa [#allocation7], 1

</llo_original>
